<compile_context>
chip_gen: v5e
topology: v5e:2x2
jax: 0.10.0
libtpu: 0.0.40
codegen_flags: <defaults>
</compile_context>

<pallas_src>
import jax
import jax.numpy as jnp
from jax import lax
from jax.experimental import pallas as pl
from jax.experimental.pallas import tpu as pltpu


def _round_up(a, b):
    return ((a + b - 1) // b) * b


def _vmem_capacity_bytes():
    """Physical per-core VMEM; conservative (v7x-sized) fallback if query fails."""
    try:
        info = pltpu.get_tpu_info()
        cap = getattr(info, "vmem_capacity_bytes", None)
        if cap:
            return int(cap)
    except Exception:
        pass
    return 64 * 1024 * 1024


def _make_kernel(Bt, batch_size, needs_row_mask):
    """Sum-of-squares reduction over the batch rows of a (Bt, Nt) block.

    acc_ref: (8, Nt) f32 scratch. Full 8-row groups accumulate with plain
    VPU adds; the 8->1 cross-sublane reduce happens once in the epilogue.
    """
    n_full = Bt // 8            # full 8-row (sublane) groups per block
    rem = Bt - n_full * 8       # remainder rows (only when Bt == batch_size)
    assert not (needs_row_mask and rem), "ragged batch chunks imply Bt % 8 == 0"

    def kernel(x_ref, o_ref, acc_ref):
        b = pl.program_id(1)

        @pl.when(b == 0)
        def _init():
            acc_ref[...] = jnp.zeros_like(acc_ref)

        if n_full > 0:
            def body(g, carry):
                start = pl.multiple_of(g * 8, 8)
                xg = x_ref[pl.ds(start, 8), :].astype(jnp.float32)
                if needs_row_mask:
                    # Rows past the real batch end (ragged last chunk) hold
                    # unspecified data -> zero them before squaring.
                    row = start + lax.broadcasted_iota(jnp.int32, xg.shape, 0)
                    xg = jnp.where(row < batch_size - b * Bt, xg, 0.0)
                acc_ref[...] += xg * xg
                return carry

            lax.fori_loop(0, n_full, body, 0)

        if rem > 0:
            xr = x_ref[n_full * 8:Bt, :].astype(jnp.float32)
            acc_ref[0:rem, :] += xr * xr

        @pl.when(b == pl.num_programs(1) - 1)
        def _finalize():
            o_ref[...] = jnp.sum(acc_ref[...], axis=0,
                                 keepdims=True).astype(o_ref.dtype)

    return kernel


def pt_module_forward(x):
    """x: (B, ...) array -> sum_b x[b]**2, shape x.shape[1:], dtype preserved."""
    B = int(x.shape[0])
    feat_shape = x.shape[1:]
    N = 1
    for d in feat_shape:
        N *= int(d)

    # Flatten features to one lane-dense axis (free reshape, no HBM copy).
    x2 = x.reshape(B, N)
    itemsize = jnp.dtype(x.dtype).itemsize
    # Dtype min-tile sublane count (f32: 8, bf16: 16, int8/fp8: 32).
    sub = {4: 8, 2: 16, 1: 32}.get(itemsize, 8)

    # ---- Feature (lane) tiling ------------------------------------------
    LANE = 128
    MAX_NT = 8192
    if N >= 2 * LANE:
        n_feat = max(2, -(-N // MAX_NT))               # >=2 tiles for v7x megacore
        Nt = _round_up(-(-N // n_feat), LANE)
    else:
        Nt = N                                         # tiny N: full-dim block
    n_feat = -(-N // Nt)

    # ---- Batch (reduction) chunking with generation-aware VMEM budget ----
    vmem_cap = _vmem_capacity_bytes()
    vmem_budget = max(32 * 2**20, min(vmem_cap - 16 * 2**20, 96 * 2**20))
    max_block_bytes = min(16 * 2**20, vmem_budget // 3)  # 2x double-buffer + slack

    row_bytes = max(1, Nt * itemsize)
    bt_target = max(sub, max_block_bytes // row_bytes)
    if B <= bt_target:
        Bt = B                         # whole batch in one chunk (full-dim block)
        needs_row_mask = False
    else:
        Bt = max(sub, (bt_target // sub) * sub)
        needs_row_mask = (B % Bt) != 0  # mask ragged rows in-kernel, no padding
    n_batch = -(-B // Bt)

    kernel = _make_kernel(Bt=Bt, batch_size=B, needs_row_mask=needs_row_mask)

    out = pl.pallas_call(
        kernel,
        out_shape=jax.ShapeDtypeStruct((1, N), x.dtype),
        grid_spec=pltpu.PrefetchScalarGridSpec(
            num_scalar_prefetch=0,
            grid=(n_feat, n_batch),      # reduction axis last
            in_specs=[pl.BlockSpec((Bt, Nt), lambda j, b: (b, j))],
            out_specs=pl.BlockSpec((1, Nt), lambda j, b: (0, j)),
            scratch_shapes=[pltpu.VMEM((8, Nt), jnp.float32)],
        ),
        compiler_params=pltpu.CompilerParams(
            dimension_semantics=("parallel", "arbitrary"),
            vmem_limit_bytes=int(vmem_budget),
        ),
    )(x2)

    return out[0].reshape(feat_shape)


if __name__ == "__main__":
    key = jax.random.PRNGKey(0)
    B, C, H, W = 2, 4, 16, 16
    x = jax.random.normal(key, (B, C, H, W), dtype=jnp.float32)

    out = pt_module_forward(x)
    out = jax.block_until_ready(out)

    # reference check (plain JAX)
    ref = jnp.sum(x ** 2, axis=0)
    assert out.shape == (C, H, W)
    assert out.dtype == x.dtype
    assert jnp.allclose(out, ref, atol=1e-5, rtol=1e-5)

    print("KERNEL_OK")
</pallas_src>

<mosaic_0001>
module attributes {stable_mosaic.version = 11 : i64} {
  func.func @kernel(%arg0: i32, %arg1: i32, %arg2: memref<2x512xf32, #tpu.memory_space<vmem>>, %arg3: memref<1x512xf32, #tpu.memory_space<vmem>>, %arg4: memref<8x512xf32, #tpu.memory_space<vmem>>) attributes {dimension_semantics = [#tpu.dimension_semantics<parallel>, #tpu.dimension_semantics<arbitrary>], iteration_bounds = array<i64: 2, 1>, scalar_prefetch = 0 : i64, scratch_operands = 1 : i64, tpu.core_type = #tpu.core_type<tc>, window_params = [{transform_indices = @transform_0, window_bounds = array<i64: 2, 512>}, {transform_indices = @transform_1, window_bounds = array<i64: 1, 512>}]} {
    %c0_i32 = arith.constant 0 : i32
    %0 = arith.cmpi eq, %arg1, %c0_i32 : i32
    %1 = arith.extui %0 : i1 to i32
    %c0_i32_0 = arith.constant 0 : i32
    %2 = arith.cmpi ne, %1, %c0_i32_0 : i32
    scf.if %2 {
      %cst = arith.constant 0.000000e+00 : f32
      %11 = vector.broadcast %cst : f32 to vector<8x512xf32>
      %c0_8 = arith.constant 0 : index
      %c0_9 = arith.constant 0 : index
      %12 = vector.load %arg4[%c0_8, %c0_9] : memref<8x512xf32, #tpu.memory_space<vmem>>, vector<8x512xf32>
      tpu.vector_store %arg4[%c0_8, %c0_9], %11 {strides = array<i32>} : memref<8x512xf32, #tpu.memory_space<vmem>>, vector<8x512xf32>,
    } else {
    }
    %c0 = arith.constant 0 : index
    %c0_1 = arith.constant 0 : index
    %3 = vector.load %arg2[%c0, %c0_1] : memref<2x512xf32, #tpu.memory_space<vmem>>, vector<2x512xf32>
    %c0_2 = arith.constant 0 : index
    %c0_3 = arith.constant 0 : index
    %4 = vector.load %arg4[%c0_2, %c0_3] : memref<8x512xf32, #tpu.memory_space<vmem>>, vector<2x512xf32>
    %5 = arith.mulf %3, %3 : vector<2x512xf32>
    %6 = arith.addf %4, %5 : vector<2x512xf32>
    %c0_4 = arith.constant 0 : index
    %c0_5 = arith.constant 0 : index
    %7 = vector.load %arg4[%c0_4, %c0_5] : memref<8x512xf32, #tpu.memory_space<vmem>>, vector<2x512xf32>
    tpu.vector_store %arg4[%c0_4, %c0_5], %6 {strides = array<i32>} : memref<8x512xf32, #tpu.memory_space<vmem>>, vector<2x512xf32>,
    %c0_i32_6 = arith.constant 0 : i32
    %8 = arith.cmpi eq, %arg1, %c0_i32_6 : i32
    %9 = arith.extui %8 : i1 to i32
    %c0_i32_7 = arith.constant 0 : i32
    %10 = arith.cmpi ne, %9, %c0_i32_7 : i32
    scf.if %10 {
      %c0_8 = arith.constant 0 : index
      %c0_9 = arith.constant 0 : index
      %11 = vector.load %arg4[%c0_8, %c0_9] : memref<8x512xf32, #tpu.memory_space<vmem>>, vector<8x512xf32>
      %cst = arith.constant dense<0.000000e+00> : vector<512xf32>
      %12 = vector.multi_reduction <add>, %11, %cst [0] : vector<8x512xf32> to vector<512xf32>
      %13 = vector.shape_cast %12 : vector<512xf32> to vector<1x512xf32>
      %c0_10 = arith.constant 0 : index
      %c0_11 = arith.constant 0 : index
      %14 = vector.load %arg3[%c0_10, %c0_11] : memref<1x512xf32, #tpu.memory_space<vmem>>, vector<1x512xf32>
      tpu.vector_store %arg3[%c0_10, %c0_11], %13 {strides = array<i32>} : memref<1x512xf32, #tpu.memory_space<vmem>>, vector<1x512xf32>,
    } else {
    }
    return
  }
  func.func @transform_0(%arg0: i32, %arg1: i32) -> (i32, i32) {
    %c0_i32 = arith.constant 0 : i32
    return %arg1, %arg0 : i32, i32
  }
  func.func @transform_1(%arg0: i32, %arg1: i32) -> (i32, i32) {
    %c0_i32 = arith.constant 0 : i32
    %c0_i32_0 = arith.constant 0 : i32
    return %c0_i32, %arg0 : i32, i32
  }
}

</mosaic_0001>

<llo_original>
// kernel: tpu_custom_call.1
$region0: #{tpu_custom_call.1}
  #allocation0 [shape = 'u32[]', space=smem, size = 0x4, offset = 0x4, fixed_abs, tag = 'smem constant byte address 0x4 - core index']
  #allocation1 [shape = 'u32[72,128]{1,0:T(1,128)}', space=vmem, size = 0x9000, scoped, tag = 'internal scratch']
  #allocation2 [shape = 'f32[8,512]{1,0:T(8,128)}', space=vmem, size = 0x4000, scoped, tag = 'scratch operand']
  %s0 = inlined_call_operand.hbm [shape: f32[2,1024], index: 0, kind: input, shape index: {}]
  %s1 = inlined_call_operand.hbm [shape: f32[1,1024], index: 1, kind: output, shape index: {}]
  %s2 = sld [smem:[#allocation0]]
  $region49: #{tpu_custom_call.1} parent=0
    _
  %s4 = ssub.s32 1, %s2
  %s5 = scalar_select 0, %s4, %s2
  $region1: #{tpu_custom_call.1} parent=0
    #allocation3 [shape = 'u8[8192]{0}', space=vmem, size = 0x2000, scoped, tag = 'input window, operand 0']
    #allocation4 [shape = 's32[2]{0}', space=sflag, size = 0x8, scoped, tag = 'scoped memory for tpu_custom_call.1']
    #allocation5 [shape = 's32[2]{0}', space=sflag, size = 0x8, scoped, tag = 'scoped memory for tpu_custom_call.1']
    #allocation6 [shape = 'u8[4096]{0}', space=vmem, size = 0x1000, scoped, tag = 'output window, operand 0']
    %6 = vsyncpa [#allocation4], 0
    %s7 = scalar_lea.sflag [#allocation4], 1
    %8 = vsyncpa %s7, 0
    %9 = vsyncpa [#allocation5], 0
    %s10 = scalar_lea.sflag [#allocation5], 1
    %11 = vsyncpa %s10, 0
    loop: start=0, step=1, limit=4
    $region2: #{tpu_custom_call.1} parent=1 // loop_pre_header
      _
    $region3: #{tpu_custom_call.1} parent=1 // loop_header
      %s13 = sphi 0, %s17
      %p14 = scmp.ge.s32.totalorder %s13, 4
      %s20 = sphi 0, %s32
      %s21 = sphi 0, %s28
      %s22 = sphi 0, %s20
      %s23 = sphi 0, %s21
      %s24 = sphi 0, %s22
      %s25 = sphi 0, %s23
      %s37 = sphi 0, %s39
      %s40 = sphi 0, %s37
      %s41 = sphi 0, %s40
      %s57 = sphi 0, %s41
      %s63 = sphi 0, %s65
      %s66 = sphi 0, %s63
      %s67 = sphi 0, %s66
      %s83 = sphi 0, %s67
    $region4: #{tpu_custom_call.1} parent=1 // loop_header_branch
      %16 = sbr.rel (%p14) target = $region8
    $region5: #{tpu_custom_call.1} parent=1 // loop_body
      %s18 = ssub.s32 %s13, 1
      %s19 = ssub.s32 %s13, 2
      %s26 = sadd.s32 1, %s21
      %p27 = scmp.ge.s32.totalorder %s26, 1
      %s28 = scalar_select %p27, 0, %s26
      %s29 = sadd.s32 1, %s20
      %s30 = scalar_select %p27, %s29, %s20
      %p31 = scmp.ge.s32.totalorder %s30, 2
      %s32 = scalar_select %p31, 0, %s30
      %s33 = ssub.s32 %s21, %s28
      %s34 = ssub.s32 %s20, %s32
      %s35 = sor.u32 %s33, %s34
      %p36 = scmp.eq.s32.totalorder %s35, 0
      %s38 = sadd.s32 %s37, 1
      %s39 = scalar_select %p36, %s37, %s38
      %p42 = pneg %p36
      %p43 = scmp.eq.s32.totalorder %s13, 1
      %p44 = por %p42, %p43
      %p45 = scmp.ne.s32.totalorder %s37, %s40
      %p46 = scmp.eq.s32.totalorder %s13, 0
      %p47 = por %p45, %p46
      %p48 = scmp.ne.s32.totalorder %s37, %s40
      %p49 = scmp.eq.s32.totalorder %s18, 1
      %p50 = por %p48, %p49
      %p51 = scmp.ne.s32.totalorder %s40, %s41
      %p52 = scmp.eq.s32.totalorder %s18, 0
      %p53 = por %p51, %p52
      %p54 = scmp.ne.s32.totalorder %s40, %s41
      %p55 = scmp.eq.s32.totalorder %s19, 1
      %p56 = por %p54, %p55
      %p58 = scmp.ne.s32.totalorder %s41, %s57
      %p59 = scmp.eq.s32.totalorder %s19, 0
      %p60 = por %p58, %p59
      %s61 = ssub.s32 %s20, %s32
      %p62 = scmp.eq.s32.totalorder %s61, 0
      %s64 = sadd.s32 %s63, 1
      %s65 = scalar_select %p62, %s63, %s64
      %p68 = pneg %p62
      %p69 = scmp.eq.s32.totalorder %s13, 1
      %p70 = por %p68, %p69
      %p71 = scmp.ne.s32.totalorder %s63, %s66
      %p72 = scmp.eq.s32.totalorder %s13, 0
      %p73 = por %p71, %p72
      %p74 = scmp.ne.s32.totalorder %s63, %s66
      %p75 = scmp.eq.s32.totalorder %s18, 1
      %p76 = por %p74, %p75
      %p77 = scmp.ne.s32.totalorder %s66, %s67
      %p78 = scmp.eq.s32.totalorder %s18, 0
      %p79 = por %p77, %p78
      %p80 = scmp.ne.s32.totalorder %s66, %s67
      %p81 = scmp.eq.s32.totalorder %s19, 1
      %p82 = por %p80, %p81
      %p84 = scmp.ne.s32.totalorder %s67, %s83
      %p85 = scmp.eq.s32.totalorder %s19, 0
      %p86 = por %p84, %p85
      %p87 = scmp.le.s32.totalorder 1, %s13
      %p88 = scmp.lt.s32.totalorder %s13, 3
      %p89 = pnand %p87, %p88
      %p90 = pneg %p89
      // Predicated region
      $region9: #{tpu_custom_call.1} parent=5 // pred_check
        _
      $region10: #{tpu_custom_call.1} parent=5 // pred_check_branch
        %92 = sbr.rel (%p89) target = $region12
      $region11: #{tpu_custom_call.1} parent=5 // pred_region
        %s93 = ssub.s32 %s13, 1
      $region12: #{tpu_custom_call.1} parent=5 // pred_fallthru
        _
      %p94 = scmp.lt.s32.totalorder %s13, 2
      // Predicated region
      $region13: #{tpu_custom_call.1} parent=5 // pred_check
        %p95 = pneg %p94
      $region14: #{tpu_custom_call.1} parent=5 // pred_check_branch
        %97 = sbr.rel (%p95) target = $region16
      $region15: #{tpu_custom_call.1} parent=5 // pred_region
        // Predicated region
        $region17: #{tpu_custom_call.1} parent=15 // pred_check
          %p98 = pneg %p47
        $region18: #{tpu_custom_call.1} parent=15 // pred_check_branch
          %100 = sbr.rel (%p98) target = $region20
        $region19: #{tpu_custom_call.1} parent=15 // pred_region
          %s101 = sand.u32 %s37, 1
          %s102 = scalar_lea.sflag [#allocation4], %s101
          %s103 = sand.u32 %s37, 1
          %s104 = smul.addr %s103, 8
          %s105 = scalar_lea.vmem [#allocation3], %s104
          %s106 = smul.u32 4, %s20
          %108 = vsyncadd %s102, 0
          %s109 = smul.addr %s21, 8
          %s110 = sadd.s32 %s106, %s109
          %s111 = smul.addr %s110, 2
          %s112 = scalar_lea.hbm %s0, %s111
          %s114 = sshll.u32 %s112, 4
          %s115 = int_to_ptr.hbm [resolvable:$true] %s114
          %s116 = sshll.u32 %s105, 4
          %s117 = int_to_ptr.vmem [resolvable:$true] %s116
          %119 = dma.hbm_to_vmem [thread:$0]  %s115, 128, %s117, %s102
        $region20: #{tpu_custom_call.1} parent=15 // pred_fallthru
          _
      $region16: #{tpu_custom_call.1} parent=5 // pred_fallthru
        _
      %p120 = scmp.le.s32.totalorder 1, %s13
      %p121 = scmp.lt.s32.totalorder %s13, 3
      %p122 = pnand %p120, %p121
      %p123 = pneg %p122
      // Predicated region
      $region21: #{tpu_custom_call.1} parent=5 // pred_check
        _
      $region22: #{tpu_custom_call.1} parent=5 // pred_check_branch
        %125 = sbr.rel (%p122) target = $region24
      $region23: #{tpu_custom_call.1} parent=5 // pred_region
        %s126 = ssub.s32 %s13, 1
        %s127 = sand.u32 %s40, 1
        %s128 = scalar_lea.sflag [#allocation4], %s127
        %s129 = sand.u32 %s40, 1
        %s130 = smul.addr %s129, 8
        %s131 = scalar_lea.vmem [#allocation3], %s130
        // Predicated region
        $region25: #{tpu_custom_call.1} parent=23 // pred_check
          %p132 = pneg %p53
        $region26: #{tpu_custom_call.1} parent=23 // pred_check_branch
          %134 = sbr.rel (%p132) target = $region28
        $region27: #{tpu_custom_call.1} parent=23 // pred_region
          %136 = dma.done %s128, 128
        $region28: #{tpu_custom_call.1} parent=23 // pred_fallthru
          _
        %s137 = sand.u32 %s40, 1
        %s138 = scalar_lea.sflag [#allocation4], %s137
        %s139 = sand.u32 %s40, 1
        %s140 = smul.addr %s139, 8
        %s141 = scalar_lea.vmem [#allocation3], %s140
        %p142 = pneg %p53
        %p143 = pneg %p50
        %p144 = pneg %p79
        %p145 = pneg %p76
        %s146 = sand.u32 %s66, 1
        %s147 = scalar_lea.sflag [#allocation5], %s146
        %s148 = sand.u32 %s66, 1
        %s149 = smul.addr %s148, 4
        %s150 = scalar_lea.vmem [#allocation6], %s149
        %s151 = smul.u32 4, %s22
        %s152 = smul.u32 4, %s22
        %p153 = scmp.eq.s32.totalorder %s23, 0
        // Predicated region
        $region29: #{tpu_custom_call.1} parent=23 // pred_check
          %p154 = pneg %p153
        $region30: #{tpu_custom_call.1} parent=23 // pred_check_branch
          %156 = sbr.rel (%p154) target = $region32
        $region31: #{tpu_custom_call.1} parent=23 // pred_region
          %157 = vst [vmem:[#allocation2] sm:$0xff] 0.0
          %158 = vst [vmem:[#allocation2 + $0x8] sm:$0xff] 0.0
          %159 = vst [vmem:[#allocation2 + $0x10] sm:$0xff] 0.0
          %160 = vst [vmem:[#allocation2 + $0x18] sm:$0xff] 0.0
        $region32: #{tpu_custom_call.1} parent=23 // pred_fallthru
          _
        %v161 = vld [vmem:[%s131] sm:$0xff]
        %v162 = vld [vmem:[#allocation2] sm:$0x3]
        %v163 = vld [vmem:[#allocation2 + $0x8] sm:$0x3]
        %v164 = vld [vmem:[#allocation2 + $0x10] sm:$0x3]
        %v165 = vld [vmem:[#allocation2 + $0x18] sm:$0x3]
        %v166 = vmul.f32 %v161, %v161
        %168 = vst [vmem:[#allocation1] ss:$4 sm:$0xff] %v166
        %v169 = vld.sshfl [vmem:[#allocation1] sm:$0xff pattern:$0x73625140]
        %v170 = vld.sshfl [vmem:[#allocation1 + $0x8] sm:$0xff pattern:$0x73625140]
        %v171 = vld.sshfl [vmem:[#allocation1 + $0x10] sm:$0xff pattern:$0x73625140]
        %v172 = vld.sshfl [vmem:[#allocation1 + $0x18] sm:$0xff pattern:$0x73625140]
        %v177 = vadd.f32 %v162, %v169
        %v178 = vadd.f32 %v163, %v170
        %v179 = vadd.f32 %v164, %v171
        %v180 = vadd.f32 %v165, %v172
        %181 = vst [vmem:[#allocation2] sm:$0x3] %v177
        %182 = vst [vmem:[#allocation2 + $0x8] sm:$0x3] %v178
        %183 = vst [vmem:[#allocation2 + $0x10] sm:$0x3] %v179
        %184 = vst [vmem:[#allocation2 + $0x18] sm:$0x3] %v180
        // Predicated region
        $region33: #{tpu_custom_call.1} parent=23 // pred_check
          %p185 = pneg %p153
        $region34: #{tpu_custom_call.1} parent=23 // pred_check_branch
          %187 = sbr.rel (%p185) target = $region36
        $region35: #{tpu_custom_call.1} parent=23 // pred_region
          %v188 = vld [vmem:[#allocation2] sm:$0xff]
          %v189 = vld [vmem:[#allocation2 + $0x8] sm:$0xff]
          %v190 = vld [vmem:[#allocation2 + $0x10] sm:$0xff]
          %v191 = vld [vmem:[#allocation2 + $0x18] sm:$0xff]
          %v192 = vrot.slane %v188, 4
          %v193 = vadd.f32 %v188, %v192
          %v194 = vrot.slane %v193, 2
          %v195 = vadd.f32 %v193, %v194
          %v196 = vrot.slane %v195, 1
          %v197 = vadd.f32 %v195, %v196
          %v198 = vrot.slane %v189, 4
          %v199 = vadd.f32 %v189, %v198
          %v200 = vrot.slane %v199, 2
          %v201 = vadd.f32 %v199, %v200
          %v202 = vrot.slane %v201, 1
          %v203 = vadd.f32 %v201, %v202
          %v204 = vrot.slane %v190, 4
          %v205 = vadd.f32 %v190, %v204
          %v206 = vrot.slane %v205, 2
          %v207 = vadd.f32 %v205, %v206
          %v208 = vrot.slane %v207, 1
          %v209 = vadd.f32 %v207, %v208
          %v210 = vrot.slane %v191, 4
          %v211 = vadd.f32 %v191, %v210
          %v212 = vrot.slane %v211, 2
          %v213 = vadd.f32 %v211, %v212
          %v214 = vrot.slane %v213, 1
          %v215 = vadd.f32 %v213, %v214
          %v220 = vrot.slane %v203, 7
          %v221 = vrot.slane %v209, 6
          %v222 = vrot.slane %v215, 5
          %vm223 = vcmask 1040384
          %v224 = vsel %vm223, %v197, %v220
          %vm225 = vcmask 1042434
          %v226 = vsel %vm225, %v221, %v222
          %vm227 = vcmask 1041408
          %v228 = vsel %vm227, %v224, %v226
          %v230 = vlaneseq
          %vm231 = vcmp.ge.s32.totalorder %v230, 0
          %vm232 = vcmp.lt.s32.totalorder %v230, 512
          %vm233 = vmand %vm231, %vm232
          %234 = vst.msk [vmem:[%s150] sm:$0xf] %vm233, %v228
        $region36: #{tpu_custom_call.1} parent=23 // pred_fallthru
          _
        %s235 = sand.u32 %s66, 1
        %s236 = scalar_lea.sflag [#allocation5], %s235
        %s237 = sand.u32 %s66, 1
        %s238 = smul.addr %s237, 4
        %s239 = scalar_lea.vmem [#allocation6], %s238
        // Predicated region
        $region37: #{tpu_custom_call.1} parent=23 // pred_check
          %p240 = pneg %p76
        $region38: #{tpu_custom_call.1} parent=23 // pred_check_branch
          %242 = sbr.rel (%p240) target = $region40
        $region39: #{tpu_custom_call.1} parent=23 // pred_region
          %s243 = smul.u32 4, %s22
          %245 = vsyncadd %s236, 0
          %s246 = scalar_lea.hbm %s1, %s243
          %s248 = sshll.u32 %s239, 4
          %s249 = int_to_ptr.vmem [resolvable:$true] %s248
          %s250 = sshll.u32 %s246, 4
          %s251 = int_to_ptr.hbm [resolvable:$true] %s250
          %253 = dma.vmem_to_hbm [thread:$0]  %s249, 64, %s251, %s236
        $region40: #{tpu_custom_call.1} parent=23 // pred_fallthru
          _
      $region24: #{tpu_custom_call.1} parent=5 // pred_fallthru
        _
      %p254 = scmp.le.s32.totalorder 2, %s13
      // Predicated region
      $region41: #{tpu_custom_call.1} parent=5 // pred_check
        %p255 = pneg %p254
      $region42: #{tpu_custom_call.1} parent=5 // pred_check_branch
        %257 = sbr.rel (%p255) target = $region44
      $region43: #{tpu_custom_call.1} parent=5 // pred_region
        %s258 = ssub.s32 %s13, 2
        // Predicated region
        $region45: #{tpu_custom_call.1} parent=43 // pred_check
          %p259 = pneg %p82
        $region46: #{tpu_custom_call.1} parent=43 // pred_check_branch
          %261 = sbr.rel (%p259) target = $region48
        $region47: #{tpu_custom_call.1} parent=43 // pred_region
          %s262 = sand.u32 %s67, 1
          %s263 = scalar_lea.sflag [#allocation5], %s262
          %s264 = sand.u32 %s67, 1
          %s265 = smul.addr %s264, 4
          %s266 = scalar_lea.vmem [#allocation6], %s265
          %268 = dma.done %s263, 64
        $region48: #{tpu_custom_call.1} parent=43 // pred_fallthru
          _
      $region44: #{tpu_custom_call.1} parent=5 // pred_fallthru
        _
    $region6: #{tpu_custom_call.1} parent=1 // loop_footer
      %s17 = sadd.s32 1, %s13
    $region7: #{tpu_custom_call.1} parent=1 // loop_footer_branch
      %12 = sbr.rel target = $region3
    $region8: #{tpu_custom_call.1} parent=1 // loop_exit
      _
    %269 = vsyncpa [#allocation4], 1
    %s270 = scalar_lea.sflag [#allocation4], 1
    %271 = vsyncpa %s270, 1
    %272 = vsyncpa [#allocation5], 1
    %s273 = scalar_lea.sflag [#allocation5], 1
    %274 = vsyncpa %s273, 1

</llo_original>
